<compile_context>
chip_gen: v5e
topology: v5e:2x2
jax: 0.10.0
libtpu: 0.0.40
codegen_flags: <defaults>
</compile_context>

<pallas_src>
import functools

import jax
import jax.numpy as jnp
from jax import lax
from jax.experimental import pallas as pl
from jax.experimental.pallas import tpu as pltpu

LANES = 128
# Combined (layout-padded) operand bytes per grid step: ~8 MiB => ~16 MiB
# double-buffered, comfortably inside the 32 MiB scoped-VMEM limit requested
# below on every generation (v5e default is only 16 MiB, hence the explicit limit).
_TARGET_STEP_BYTES = 8 * 1024 * 1024
_VMEM_LIMIT_BYTES = 32 * 1024 * 1024


def _round_up(x, m):
    return ((x + m - 1) // m) * m


def _sublane(dtype):
    # Sublane packing of the second-minor dim: 8 for 4-byte, 16 for 2-byte,
    # 32 for 1-byte dtypes (bool is stored as one byte).
    return 8 * max(1, 4 // jnp.dtype(dtype).itemsize)


def _padded_row_bytes(rest, dtype):
    """Layout-padded bytes occupied per leading-dim index of a block."""
    itemsize = jnp.dtype(dtype).itemsize
    if len(rest) == 1:
        # 2-D array (lead, W): one sublane row of lane-padded data per index.
        return _round_up(rest[0], LANES) * itemsize
    h, w = rest
    return _round_up(h, _sublane(dtype)) * _round_up(w, LANES) * itemsize


def _masked_sq_sum_kernel(o_ref, t_ref, m_ref, out_ref, acc_ref, *,
                          num_tiles, tiles_per_split, lead_rem):
    c = pl.program_id(0)                 # split index ("parallel"; both TCs on v7x)
    i = pl.program_id(1)                 # tile index within the split ("arbitrary")
    tile_idx = c * tiles_per_split + i   # logical (unclamped) tile index

    @pl.when(i == 0)
    def _():
        acc_ref[...] = jnp.zeros_like(acc_ref)

    def accumulate(valid_rows=None):
        # Inputs arrive at native dtype; upcast in VMEM.
        o = o_ref[...].astype(jnp.float32)
        t = t_ref[...].astype(jnp.float32)
        d = o - t
        sq = d * d
        if valid_rows is not None:            # only traced for a ragged last tile
            sq = jnp.where(valid_rows, sq, jnp.float32(0.0))
        # masked_fill_(mask, 0.0): masked positions contribute 0 to the sum.
        contrib = jnp.where(m_ref[...], jnp.float32(0.0), sq)
        # Reduce all leading axes; keep the minor (lane) axis in the accumulator
        # so the cross-lane reduce is deferred to the wrapper.
        red = contrib
        while red.ndim > 2:
            red = jnp.sum(red, axis=0)
        acc_ref[...] += jnp.sum(red, axis=0, keepdims=True)

    if lead_rem == 0:
        # Every real tile is full; only a clamped duplicate step (if any) skips.
        @pl.when(tile_idx < num_tiles)
        def _():
            accumulate()
    else:
        # Steady state: full tiles, no iota / row-validity work on the hot path.
        @pl.when(tile_idx < num_tiles - 1)
        def _():
            accumulate()

        # Last real tile is ragged along the leading dim: mask the tail rows.
        @pl.when(tile_idx == num_tiles - 1)
        def _():
            rows = lax.broadcasted_iota(jnp.int32, o_ref.shape, 0)
            accumulate(valid_rows=rows < lead_rem)

    @pl.when(i == tiles_per_split - 1)
    def _():
        out_ref[0] = acc_ref[...]


def masked_l2_loss(outputs, targets, mask):
    """Scalar f32 = mean over ALL elements of (outputs - targets)**2 with
    masked positions zeroed; matches MSELoss('none') -> masked_fill_ -> mean()."""
    assert outputs.shape == targets.shape == mask.shape
    n_elem = outputs.size
    assert n_elem > 0

    if mask.dtype != jnp.bool_:
        mask = mask.astype(jnp.bool_)
    o, t, m = outputs, targets, mask

    # Present operands as 2-D (lead, W) or 3-D (lead, H, W).  Only *leading*
    # dims are collapsed, which preserves the TPU minor-dim tiling -> no
    # relayout copy is introduced by these reshapes.
    if o.ndim == 0:
        o, t, m = (x.reshape(1, 1) for x in (o, t, m))
    elif o.ndim == 1:
        o, t, m = (x.reshape(1, -1) for x in (o, t, m))
    elif o.ndim > 3:
        new_shape = (-1,) + o.shape[-2:]
        o, t, m = (x.reshape(new_shape) for x in (o, t, m))

    rest = o.shape[1:]
    step_row_bytes = (_padded_row_bytes(rest, o.dtype)
                      + _padded_row_bytes(rest, t.dtype)
                      + _padded_row_bytes(rest, m.dtype))
    min_rows = 32 if len(rest) == 1 else 1

    if min_rows * step_row_bytes > _TARGET_STEP_BYTES:
        # Extreme aspect ratio: trailing dims alone overflow a VMEM tile.  Fall
        # back to a flat (rows, 128) view (this reshape may relayout -> one
        # extra HBM pass, but it only triggers for pathological shapes).
        flat_len = _round_up(n_elem, LANES)
        pad = flat_len - n_elem

        def _flat(x):
            x = x.reshape(-1)
            if pad:
                x = jnp.pad(x, (0, pad))          # zeros/False: contribute 0
            return x.reshape(flat_len // LANES, LANES)

        o, t, m = _flat(o), _flat(t), _flat(m)
        rest = (LANES,)
        step_row_bytes = (_padded_row_bytes(rest, o.dtype)
                          + _padded_row_bytes(rest, t.dtype)
                          + _padded_row_bytes(rest, m.dtype))

    lead = o.shape[0]
    w = o.shape[-1]
    block_ndim = o.ndim                    # 2 or 3

    # Tile the leading dim so one step moves ~_TARGET_STEP_BYTES of data.
    tile0 = max(1, _TARGET_STEP_BYTES // step_row_bytes)
    if tile0 >= lead:
        tile0 = lead
    elif block_ndim == 2:
        # 2-D blocks: the second-minor block dim must be a multiple of the
        # sublane packing (32 covers the 1-byte mask) unless it spans the array.
        tile0 = max(32, (tile0 // 32) * 32)
        if tile0 >= lead:
            tile0 = lead

    num_tiles = pl.cdiv(lead, tile0)
    lead_rem = lead % tile0                # 0 => no ragged last tile

    # Two splits for the v7x dual-TensorCore case; 1 split for tiny inputs.
    splits = 2 if num_tiles >= 2 else 1
    tiles_per_split = pl.cdiv(num_tiles, splits)

    def in_index_map(c, i):
        idx = c * tiles_per_split + i
        # Clamp: a wasted trailing step re-points at the block fetched by the
        # previous step, so the pipeline issues no extra DMA for it.
        idx = jnp.minimum(idx, num_tiles - 1)
        return (idx,) + (0,) * (block_ndim - 1)

    in_spec = pl.BlockSpec((tile0,) + rest, in_index_map)

    kernel = functools.partial(
        _masked_sq_sum_kernel,
        num_tiles=num_tiles,
        tiles_per_split=tiles_per_split,
        lead_rem=lead_rem,
    )

    partials = pl.pallas_call(
        kernel,
        out_shape=jax.ShapeDtypeStruct((splits, 1, w), jnp.float32),
        grid_spec=pltpu.PrefetchScalarGridSpec(
            num_scalar_prefetch=0,
            grid=(splits, tiles_per_split),
            in_specs=[in_spec, in_spec, in_spec],
            out_specs=pl.BlockSpec((1, 1, w), lambda c, i: (c, 0, 0)),
            scratch_shapes=[pltpu.VMEM((1, w), jnp.float32)],
        ),
        compiler_params=pltpu.CompilerParams(
            dimension_semantics=("parallel", "arbitrary"),
            vmem_limit_bytes=_VMEM_LIMIT_BYTES,
        ),
    )(o, t, m)

    total = jnp.sum(partials)              # final cross-lane / cross-split reduce
    return (total / jnp.float32(n_elem)).astype(jnp.float32)


if __name__ == "__main__":
    key = jax.random.PRNGKey(0)
    k1, k2, k3 = jax.random.split(key, 3)

    # NCHW like the PyTorch module: batch=2, channels=4, spatial=16x16
    shape = (2, 4, 16, 16)
    outputs = jax.random.normal(k1, shape, dtype=jnp.float32)
    targets = jax.random.normal(k2, shape, dtype=jnp.float32)
    mask = jax.random.bernoulli(k3, p=0.3, shape=shape)

    loss_fn = jax.jit(masked_l2_loss)
    loss = jax.block_until_ready(loss_fn(outputs, targets, mask))

    # Pure-JAX reference check
    ref = jnp.mean(jnp.where(mask, 0.0, (outputs - targets) ** 2))
    assert jnp.allclose(loss, ref, rtol=1e-5, atol=1e-6), (loss, ref)

    print("KERNEL_OK")
</pallas_src>

<mosaic_0001>
module attributes {stable_mosaic.version = 11 : i64} {
  func.func @_masked_sq_sum_kernel(%arg0: i32, %arg1: i32, %arg2: memref<8x16x16xf32, #tpu.memory_space<vmem>>, %arg3: memref<8x16x16xf32, #tpu.memory_space<vmem>>, %arg4: memref<8x16x16xi32, #tpu.memory_space<vmem>>, %arg5: memref<1x1x16xf32, #tpu.memory_space<vmem>>, %arg6: memref<1x16xf32, #tpu.memory_space<vmem>>) attributes {dimension_semantics = [#tpu.dimension_semantics<parallel>, #tpu.dimension_semantics<arbitrary>], iteration_bounds = array<i64: 1, 1>, scalar_prefetch = 0 : i64, scratch_operands = 1 : i64, tpu.core_type = #tpu.core_type<tc>, window_params = [{transform_indices = @transform_0, window_bounds = array<i64: 8, 16, 16>}, {transform_indices = @transform_1, window_bounds = array<i64: 8, 16, 16>}, {transform_indices = @transform_2, window_bounds = array<i64: 8, 16, 16>}, {transform_indices = @transform_3, window_bounds = array<i64: 1, 1, 16>}]} {
    %c1_i32 = arith.constant 1 : i32
    %0 = arith.muli %arg0, %c1_i32 : i32
    %1 = arith.addi %0, %arg1 : i32
    %c0_i32 = arith.constant 0 : i32
    %2 = arith.cmpi eq, %arg1, %c0_i32 : i32
    %3 = arith.extui %2 : i1 to i32
    %c0_i32_0 = arith.constant 0 : i32
    %4 = arith.cmpi ne, %3, %c0_i32_0 : i32
    scf.if %4 {
      %cst = arith.constant 0.000000e+00 : f32
      %11 = vector.broadcast %cst : f32 to vector<1x16xf32>
      %c0 = arith.constant 0 : index
      %c0_5 = arith.constant 0 : index
      %12 = vector.load %arg6[%c0, %c0_5] : memref<1x16xf32, #tpu.memory_space<vmem>>, vector<1x16xf32>
      tpu.vector_store %arg6[%c0, %c0_5], %11 {strides = array<i32>} : memref<1x16xf32, #tpu.memory_space<vmem>>, vector<1x16xf32>,
    } else {
    }
    %c1_i32_1 = arith.constant 1 : i32
    %5 = arith.cmpi slt, %1, %c1_i32_1 : i32
    %6 = arith.extui %5 : i1 to i32
    %c0_i32_2 = arith.constant 0 : i32
    %7 = arith.cmpi ne, %6, %c0_i32_2 : i32
    scf.if %7 {
      %c0 = arith.constant 0 : index
      %c0_5 = arith.constant 0 : index
      %c0_6 = arith.constant 0 : index
      %11 = vector.load %arg2[%c0, %c0_5, %c0_6] : memref<8x16x16xf32, #tpu.memory_space<vmem>>, vector<8x16x16xf32>
      %c0_7 = arith.constant 0 : index
      %c0_8 = arith.constant 0 : index
      %c0_9 = arith.constant 0 : index
      %12 = vector.load %arg3[%c0_7, %c0_8, %c0_9] : memref<8x16x16xf32, #tpu.memory_space<vmem>>, vector<8x16x16xf32>
      %13 = arith.subf %11, %12 : vector<8x16x16xf32>
      %14 = arith.mulf %13, %13 : vector<8x16x16xf32>
      %c0_10 = arith.constant 0 : index
      %c0_11 = arith.constant 0 : index
      %c0_12 = arith.constant 0 : index
      %15 = vector.load %arg4[%c0_10, %c0_11, %c0_12] : memref<8x16x16xi32, #tpu.memory_space<vmem>>, vector<8x16x16xi32>
      %cst = arith.constant dense<0> : vector<8x16x16xi32>
      %16 = arith.cmpi ne, %15, %cst : vector<8x16x16xi32>
      %cst_13 = arith.constant 0.000000e+00 : f32
      %17 = vector.broadcast %cst_13 : f32 to vector<8x16x16xf32>
      %18 = arith.select %16, %17, %14 : vector<8x16x16xi1>, vector<8x16x16xf32>
      %cst_14 = arith.constant dense<0.000000e+00> : vector<16x16xf32>
      %19 = vector.multi_reduction <add>, %18, %cst_14 [0] : vector<8x16x16xf32> to vector<16x16xf32>
      %c0_15 = arith.constant 0 : index
      %c0_16 = arith.constant 0 : index
      %20 = vector.load %arg6[%c0_15, %c0_16] : memref<1x16xf32, #tpu.memory_space<vmem>>, vector<1x16xf32>
      %cst_17 = arith.constant dense<0.000000e+00> : vector<16xf32>
      %21 = vector.multi_reduction <add>, %19, %cst_17 [0] : vector<16x16xf32> to vector<16xf32>
      %22 = vector.shape_cast %21 : vector<16xf32> to vector<1x16xf32>
      %23 = arith.addf %20, %22 : vector<1x16xf32>
      %c0_18 = arith.constant 0 : index
      %c0_19 = arith.constant 0 : index
      %24 = vector.load %arg6[%c0_18, %c0_19] : memref<1x16xf32, #tpu.memory_space<vmem>>, vector<1x16xf32>
      tpu.vector_store %arg6[%c0_18, %c0_19], %23 {strides = array<i32>} : memref<1x16xf32, #tpu.memory_space<vmem>>, vector<1x16xf32>,
    } else {
    }
    %c0_i32_3 = arith.constant 0 : i32
    %8 = arith.cmpi eq, %arg1, %c0_i32_3 : i32
    %9 = arith.extui %8 : i1 to i32
    %c0_i32_4 = arith.constant 0 : i32
    %10 = arith.cmpi ne, %9, %c0_i32_4 : i32
    scf.if %10 {
      %c0 = arith.constant 0 : index
      %c0_5 = arith.constant 0 : index
      %11 = vector.load %arg6[%c0, %c0_5] : memref<1x16xf32, #tpu.memory_space<vmem>>, vector<1x16xf32>
      %c0_6 = arith.constant 0 : index
      %c0_7 = arith.constant 0 : index
      %c0_8 = arith.constant 0 : index
      %12 = vector.load %arg5[%c0_6, %c0_7, %c0_8] : memref<1x1x16xf32, #tpu.memory_space<vmem>>, vector<1x1x16xf32>
      %13 = vector.shape_cast %12 : vector<1x1x16xf32> to vector<1x16xf32>
      %14 = vector.shape_cast %11 : vector<1x16xf32> to vector<1x1x16xf32>
      tpu.vector_store %arg5[%c0_6, %c0_7, %c0_8], %14 {strides = array<i32>} : memref<1x1x16xf32, #tpu.memory_space<vmem>>, vector<1x1x16xf32>,
    } else {
    }
    return
  }
  func.func @transform_0(%arg0: i32, %arg1: i32) -> (i32, i32, i32) {
    %c1_i32 = arith.constant 1 : i32
    %0 = arith.muli %arg0, %c1_i32 : i32
    %1 = arith.addi %0, %arg1 : i32
    %c0_i32 = arith.constant 0 : i32
    %2 = arith.minsi %1, %c0_i32 : i32
    %c0_i32_0 = arith.constant 0 : i32
    %c0_i32_1 = arith.constant 0 : i32
    %c0_i32_2 = arith.constant 0 : i32
    return %2, %c0_i32_0, %c0_i32_1 : i32, i32, i32
  }
  func.func @transform_1(%arg0: i32, %arg1: i32) -> (i32, i32, i32) {
    %c1_i32 = arith.constant 1 : i32
    %0 = arith.muli %arg0, %c1_i32 : i32
    %1 = arith.addi %0, %arg1 : i32
    %c0_i32 = arith.constant 0 : i32
    %2 = arith.minsi %1, %c0_i32 : i32
    %c0_i32_0 = arith.constant 0 : i32
    %c0_i32_1 = arith.constant 0 : i32
    %c0_i32_2 = arith.constant 0 : i32
    return %2, %c0_i32_0, %c0_i32_1 : i32, i32, i32
  }
  func.func @transform_2(%arg0: i32, %arg1: i32) -> (i32, i32, i32) {
    %c1_i32 = arith.constant 1 : i32
    %0 = arith.muli %arg0, %c1_i32 : i32
    %1 = arith.addi %0, %arg1 : i32
    %c0_i32 = arith.constant 0 : i32
    %2 = arith.minsi %1, %c0_i32 : i32
    %c0_i32_0 = arith.constant 0 : i32
    %c0_i32_1 = arith.constant 0 : i32
    %c0_i32_2 = arith.constant 0 : i32
    return %2, %c0_i32_0, %c0_i32_1 : i32, i32, i32
  }
  func.func @transform_3(%arg0: i32, %arg1: i32) -> (i32, i32, i32) {
    %c0_i32 = arith.constant 0 : i32
    %c0_i32_0 = arith.constant 0 : i32
    %c0_i32_1 = arith.constant 0 : i32
    return %arg0, %c0_i32, %c0_i32_0 : i32, i32, i32
  }
}

</mosaic_0001>

<llo_original>
// kernel: masked_l2_loss.1
$region0: #{masked_l2_loss.1}
  #allocation0 [shape = 'u32[]', space=smem, size = 0x4, offset = 0x4, fixed_abs, tag = 'smem constant byte address 0x4 - core index']
  #allocation1 [shape = 'u32[72,128]{1,0:T(1,128)}', space=vmem, size = 0x9000, scoped, tag = 'internal scratch']
  #allocation2 [shape = 'f32[1,16]{1,0:T(1,128)}', space=vmem, size = 0x200, scoped, tag = 'scratch operand']
  %s0 = inlined_call_operand.vmem [shape: f32[8,16,16], index: 0, kind: input, shape index: {}]
  %s1 = inlined_call_operand.hbm [shape: f32[8,16,16], index: 1, kind: input, shape index: {}]
  %s2 = inlined_call_operand.vmem [shape: s32[8,16,16], index: 2, kind: input, shape index: {}]
  %s3 = inlined_call_operand.vmem [shape: f32[1,1,16], index: 3, kind: output, shape index: {}]
  %s4 = sld [smem:[#allocation0]]
  $region38: #{masked_l2_loss.1} parent=0
    _
  %s6 = ssub.s32 1, %s4
  %s7 = scalar_select 0, %s6, %s4
  $region1: #{masked_l2_loss.1} parent=0
    #allocation3 [shape = 'u8[65536]{0}', space=vmem, size = 0x10000, scoped, tag = 'input window, operand 1, single buffered']
    #allocation4 [shape = 's32[1]{0}', space=sflag, size = 0x4, scoped, tag = 'scoped memory for masked_l2_loss.1']
    %8 = vsyncpa [#allocation4], 0
    // Predicated region
    $region2: #{masked_l2_loss.1} parent=1 // pred_check
      _
    $region3: #{masked_l2_loss.1} parent=1 // pred_check_branch
      %10 = sbr.rel (0) target = $region5
    $region4: #{masked_l2_loss.1} parent=1 // pred_region
      %s11 = sadd.s32 0, 0
      %p12 = scmp.lt.s32.totalorder %s11, 0
      %s13 = scalar_select %p12, %s11, 0
      %s14 = smul.u32 8, %s13
      %p15 = scmp.lt.s32.totalorder %s14, 7
      %s16 = scalar_select %p15, %s14, 7
      %s17 = smul.addr %s16, 2
      %s18 = smul.addr %s17, 8
      %s19 = scalar_lea.vmem %s0, %s18
      %s20 = sadd.s32 0, 0
      %p21 = scmp.lt.s32.totalorder %s20, 0
      %s22 = scalar_select %p21, %s20, 0
      %s23 = smul.u32 8, %s22
    $region5: #{masked_l2_loss.1} parent=1 // pred_fallthru
      _
    // Predicated region
    $region6: #{masked_l2_loss.1} parent=1 // pred_check
      _
    $region7: #{masked_l2_loss.1} parent=1 // pred_check_branch
      %25 = sbr.rel (0) target = $region9
    $region8: #{masked_l2_loss.1} parent=1 // pred_region
      %s26 = sadd.s32 0, 0
      %p27 = scmp.lt.s32.totalorder %s26, 0
      %s28 = scalar_select %p27, %s26, 0
      %s29 = smul.u32 8, %s28
      %31 = vsyncadd [#allocation4], 0
      %s32 = smul.addr %s29, 2
      %s33 = smul.addr %s32, 8
      %s34 = scalar_lea.hbm %s1, %s33
      %s35 = sshll.u32 %s34, 4
      %s36 = int_to_ptr.hbm [resolvable:$true] %s35
      %s37 = sshll.u32 [#allocation3], 4
      %s38 = int_to_ptr.vmem [resolvable:$true] %s37
      %43 = dma.hbm_to_vmem [thread:$0]  %s36, 2048, %s38, [#allocation4], 128, 128, 8
    $region9: #{masked_l2_loss.1} parent=1 // pred_fallthru
      _
    // Predicated region
    $region10: #{masked_l2_loss.1} parent=1 // pred_check
      _
    $region11: #{masked_l2_loss.1} parent=1 // pred_check_branch
      %45 = sbr.rel (0) target = $region13
    $region12: #{masked_l2_loss.1} parent=1 // pred_region
      %s46 = sadd.s32 0, 0
      %p47 = scmp.lt.s32.totalorder %s46, 0
      %s48 = scalar_select %p47, %s46, 0
      %s49 = smul.u32 8, %s48
      %p50 = scmp.lt.s32.totalorder %s49, 7
      %s51 = scalar_select %p50, %s49, 7
      %s52 = smul.addr %s51, 2
      %s53 = smul.addr %s52, 8
      %s54 = scalar_lea.vmem %s2, %s53
      %s55 = sadd.s32 0, 0
      %p56 = scmp.lt.s32.totalorder %s55, 0
      %s57 = scalar_select %p56, %s55, 0
      %s58 = smul.u32 8, %s57
    $region13: #{masked_l2_loss.1} parent=1 // pred_fallthru
      _
    // Predicated region
    $region14: #{masked_l2_loss.1} parent=1 // pred_check
      _
    $region15: #{masked_l2_loss.1} parent=1 // pred_check_branch
      %60 = sbr.rel (0) target = $region17
    $region16: #{masked_l2_loss.1} parent=1 // pred_region
      %62 = dma.done [#allocation4], 2048
    $region17: #{masked_l2_loss.1} parent=1 // pred_fallthru
      _
    %s63 = sadd.s32 0, 0
    %p64 = scmp.lt.s32.totalorder %s63, 0
    %s65 = scalar_select %p64, %s63, 0
    %s66 = smul.u32 8, %s65
    %p67 = scmp.lt.s32.totalorder %s66, 7
    %s68 = scalar_select %p67, %s66, 7
    %s69 = smul.addr %s68, 2
    %s70 = smul.addr %s69, 8
    %s71 = scalar_lea.vmem %s0, %s70
    %s72 = sadd.s32 0, 0
    %p73 = scmp.lt.s32.totalorder %s72, 0
    %s74 = scalar_select %p73, %s72, 0
    %s75 = smul.u32 8, %s74
    %p76 = scmp.lt.s32.totalorder %s75, 7
    %s77 = scalar_select %p76, %s75, 7
    %s78 = smul.addr %s77, 2
    %s79 = smul.addr %s78, 8
    %s80 = scalar_lea.vmem %s2, %s79
    %s81 = sadd.s32 0, 0
    %p82 = scmp.lt.s32.totalorder %s81, 0
    %s83 = scalar_select %p82, %s81, 0
    %s84 = smul.u32 8, %s83
    %p85 = scmp.lt.s32.totalorder %s84, 7
    %s86 = scalar_select %p85, %s84, 7
    %s87 = smul.addr %s86, 2
    %s88 = smul.addr %s87, 8
    %s89 = scalar_lea.vmem %s0, %s88
    %s90 = sadd.s32 0, 0
    %p91 = scmp.lt.s32.totalorder %s90, 0
    %s92 = scalar_select %p91, %s90, 0
    %s93 = smul.u32 8, %s92
    %s94 = sadd.s32 0, 0
    %p95 = scmp.lt.s32.totalorder %s94, 0
    %s96 = scalar_select %p95, %s94, 0
    %s97 = smul.u32 8, %s96
    %s98 = sadd.s32 0, 0
    %p99 = scmp.lt.s32.totalorder %s98, 0
    %s100 = scalar_select %p99, %s98, 0
    %s101 = smul.u32 8, %s100
    %p102 = scmp.lt.s32.totalorder %s101, 7
    %s103 = scalar_select %p102, %s101, 7
    %s104 = smul.addr %s103, 2
    %s105 = smul.addr %s104, 8
    %s106 = scalar_lea.vmem %s2, %s105
    %s107 = sadd.s32 0, 0
    %p108 = scmp.lt.s32.totalorder %s107, 0
    %s109 = scalar_select %p108, %s107, 0
    %s110 = smul.u32 8, %s109
    %s111 = sadd.s32 0, 0
    %p112 = scmp.eq.s32.totalorder 0, 0
    // Predicated region
    $region18: #{masked_l2_loss.1} parent=1 // pred_check
      %p113 = pneg %p112
    $region19: #{masked_l2_loss.1} parent=1 // pred_check_branch
      %115 = sbr.rel (%p113) target = $region21
    $region20: #{masked_l2_loss.1} parent=1 // pred_region
      %vm116 = vcmask 122880
      %117 = vst.msk [vmem:[#allocation2] sm:$0x1] %vm116, 0.0
    $region21: #{masked_l2_loss.1} parent=1 // pred_fallthru
      _
    %p118 = scmp.lt.s32.totalorder %s111, 1
    // Predicated region
    $region22: #{masked_l2_loss.1} parent=1 // pred_check
      %p119 = pneg %p118
    $region23: #{masked_l2_loss.1} parent=1 // pred_check_branch
      %121 = sbr.rel (%p119) target = $region25
    $region24: #{masked_l2_loss.1} parent=1 // pred_region
      %v122 = vld [vmem:[%s89] sm:$0xff]
      %v123 = vld [vmem:[%s89 + $0x8] sm:$0xff]
      %v124 = vld [vmem:[%s89 + $0x10] sm:$0xff]
      %v125 = vld [vmem:[%s89 + $0x18] sm:$0xff]
      %v126 = vld [vmem:[%s89 + $0x20] sm:$0xff]
      %v127 = vld [vmem:[%s89 + $0x28] sm:$0xff]
      %v128 = vld [vmem:[%s89 + $0x30] sm:$0xff]
      %v129 = vld [vmem:[%s89 + $0x38] sm:$0xff]
      %v130 = vld [vmem:[%s89 + $0x40] sm:$0xff]
      %v131 = vld [vmem:[%s89 + $0x48] sm:$0xff]
      %v132 = vld [vmem:[%s89 + $0x50] sm:$0xff]
      %v133 = vld [vmem:[%s89 + $0x58] sm:$0xff]
      %v134 = vld [vmem:[%s89 + $0x60] sm:$0xff]
      %v135 = vld [vmem:[%s89 + $0x68] sm:$0xff]
      %v136 = vld [vmem:[%s89 + $0x70] sm:$0xff]
      %v137 = vld [vmem:[%s89 + $0x78] sm:$0xff]
      %v138 = vld [vmem:[#allocation3] sm:$0xff]
      %v139 = vld [vmem:[#allocation3 + $0x8] sm:$0xff]
      %v140 = vld [vmem:[#allocation3 + $0x10] sm:$0xff]
      %v141 = vld [vmem:[#allocation3 + $0x18] sm:$0xff]
      %v142 = vld [vmem:[#allocation3 + $0x20] sm:$0xff]
      %v143 = vld [vmem:[#allocation3 + $0x28] sm:$0xff]
      %v144 = vld [vmem:[#allocation3 + $0x30] sm:$0xff]
      %v145 = vld [vmem:[#allocation3 + $0x38] sm:$0xff]
      %v146 = vld [vmem:[#allocation3 + $0x40] sm:$0xff]
      %v147 = vld [vmem:[#allocation3 + $0x48] sm:$0xff]
      %v148 = vld [vmem:[#allocation3 + $0x50] sm:$0xff]
      %v149 = vld [vmem:[#allocation3 + $0x58] sm:$0xff]
      %v150 = vld [vmem:[#allocation3 + $0x60] sm:$0xff]
      %v151 = vld [vmem:[#allocation3 + $0x68] sm:$0xff]
      %v152 = vld [vmem:[#allocation3 + $0x70] sm:$0xff]
      %v153 = vld [vmem:[#allocation3 + $0x78] sm:$0xff]
      %v154 = vsub.f32 %v122, %v138
      %v155 = vsub.f32 %v123, %v139
      %v156 = vsub.f32 %v124, %v140
      %v157 = vsub.f32 %v125, %v141
      %v158 = vsub.f32 %v126, %v142
      %v159 = vsub.f32 %v127, %v143
      %v160 = vsub.f32 %v128, %v144
      %v161 = vsub.f32 %v129, %v145
      %v162 = vsub.f32 %v130, %v146
      %v163 = vsub.f32 %v131, %v147
      %v164 = vsub.f32 %v132, %v148
      %v165 = vsub.f32 %v133, %v149
      %v166 = vsub.f32 %v134, %v150
      %v167 = vsub.f32 %v135, %v151
      %v168 = vsub.f32 %v136, %v152
      %v169 = vsub.f32 %v137, %v153
      %v170 = vmul.f32 %v154, %v154
      %v171 = vmul.f32 %v155, %v155
      %v172 = vmul.f32 %v156, %v156
      %v173 = vmul.f32 %v157, %v157
      %v174 = vmul.f32 %v158, %v158
      %v175 = vmul.f32 %v159, %v159
      %v176 = vmul.f32 %v160, %v160
      %v177 = vmul.f32 %v161, %v161
      %v178 = vmul.f32 %v162, %v162
      %v179 = vmul.f32 %v163, %v163
      %v180 = vmul.f32 %v164, %v164
      %v181 = vmul.f32 %v165, %v165
      %v182 = vmul.f32 %v166, %v166
      %v183 = vmul.f32 %v167, %v167
      %v184 = vmul.f32 %v168, %v168
      %v185 = vmul.f32 %v169, %v169
      %v186 = vld [vmem:[%s106] sm:$0xff]
      %v187 = vld [vmem:[%s106 + $0x8] sm:$0xff]
      %v188 = vld [vmem:[%s106 + $0x10] sm:$0xff]
      %v189 = vld [vmem:[%s106 + $0x18] sm:$0xff]
      %v190 = vld [vmem:[%s106 + $0x20] sm:$0xff]
      %v191 = vld [vmem:[%s106 + $0x28] sm:$0xff]
      %v192 = vld [vmem:[%s106 + $0x30] sm:$0xff]
      %v193 = vld [vmem:[%s106 + $0x38] sm:$0xff]
      %v194 = vld [vmem:[%s106 + $0x40] sm:$0xff]
      %v195 = vld [vmem:[%s106 + $0x48] sm:$0xff]
      %v196 = vld [vmem:[%s106 + $0x50] sm:$0xff]
      %v197 = vld [vmem:[%s106 + $0x58] sm:$0xff]
      %v198 = vld [vmem:[%s106 + $0x60] sm:$0xff]
      %v199 = vld [vmem:[%s106 + $0x68] sm:$0xff]
      %v200 = vld [vmem:[%s106 + $0x70] sm:$0xff]
      %v201 = vld [vmem:[%s106 + $0x78] sm:$0xff]
      %vm202 = vcmp.ne.s32.totalorder %v186, 0
      %vm203 = vcmp.ne.s32.totalorder %v187, 0
      %vm204 = vcmp.ne.s32.totalorder %v188, 0
      %vm205 = vcmp.ne.s32.totalorder %v189, 0
      %vm206 = vcmp.ne.s32.totalorder %v190, 0
      %vm207 = vcmp.ne.s32.totalorder %v191, 0
      %vm208 = vcmp.ne.s32.totalorder %v192, 0
      %vm209 = vcmp.ne.s32.totalorder %v193, 0
      %vm210 = vcmp.ne.s32.totalorder %v194, 0
      %vm211 = vcmp.ne.s32.totalorder %v195, 0
      %vm212 = vcmp.ne.s32.totalorder %v196, 0
      %vm213 = vcmp.ne.s32.totalorder %v197, 0
      %vm214 = vcmp.ne.s32.totalorder %v198, 0
      %vm215 = vcmp.ne.s32.totalorder %v199, 0
      %vm216 = vcmp.ne.s32.totalorder %v200, 0
      %vm217 = vcmp.ne.s32.totalorder %v201, 0
      %v218 = vsel %vm202, 0.0, %v170
      %v219 = vsel %vm203, 0.0, %v171
      %v220 = vsel %vm204, 0.0, %v172
      %v221 = vsel %vm205, 0.0, %v173
      %v222 = vsel %vm206, 0.0, %v174
      %v223 = vsel %vm207, 0.0, %v175
      %v224 = vsel %vm208, 0.0, %v176
      %v225 = vsel %vm209, 0.0, %v177
      %v226 = vsel %vm210, 0.0, %v178
      %v227 = vsel %vm211, 0.0, %v179
      %v228 = vsel %vm212, 0.0, %v180
      %v229 = vsel %vm213, 0.0, %v181
      %v230 = vsel %vm214, 0.0, %v182
      %v231 = vsel %vm215, 0.0, %v183
      %v232 = vsel %vm216, 0.0, %v184
      %v233 = vsel %vm217, 0.0, %v185
      %vm234 = vcmask 130048
      %v235 = vsel %vm234, %v218, 0.0
      %v236 = vsel %vm234, %v220, 0.0
      %v237 = vadd.f32 %v235, %v236
      %v238 = vsel %vm234, %v222, 0.0
      %v239 = vadd.f32 %v237, %v238
      %v240 = vsel %vm234, %v224, 0.0
      %v241 = vadd.f32 %v239, %v240
      %v242 = vsel %vm234, %v226, 0.0
      %v243 = vadd.f32 %v241, %v242
      %v244 = vsel %vm234, %v228, 0.0
      %v245 = vadd.f32 %v243, %v244
      %v246 = vsel %vm234, %v230, 0.0
      %v247 = vadd.f32 %v245, %v246
      %v248 = vsel %vm234, %v232, 0.0
      %v249 = vadd.f32 %v247, %v248
      %v250 = vsel %vm234, %v219, 0.0
      %v251 = vsel %vm234, %v221, 0.0
      %v252 = vadd.f32 %v250, %v251
      %v253 = vsel %vm234, %v223, 0.0
      %v254 = vadd.f32 %v252, %v253
      %v255 = vsel %vm234, %v225, 0.0
      %v256 = vadd.f32 %v254, %v255
      %v257 = vsel %vm234, %v227, 0.0
      %v258 = vadd.f32 %v256, %v257
      %v259 = vsel %vm234, %v229, 0.0
      %v260 = vadd.f32 %v258, %v259
      %v261 = vsel %vm234, %v231, 0.0
      %v262 = vadd.f32 %v260, %v261
      %v263 = vsel %vm234, %v233, 0.0
      %v264 = vadd.f32 %v262, %v263
      %v265 = vld [vmem:[#allocation2] sm:$0x1]
      %v266 = vsel %vm234, %v249, 0.0
      %v267 = vsel %vm234, %v264, 0.0
      %v268 = vadd.f32 %v266, %v267
      %v269 = vrot.slane %v268, 4
      %v270 = vadd.f32 %v268, %v269
      %v271 = vrot.slane %v270, 2
      %v272 = vadd.f32 %v270, %v271
      %v273 = vrot.slane %v272, 1
      %v274 = vadd.f32 %v272, %v273
      %v275 = vadd.f32 %v265, %v274
      %vm276 = vcmask 122880
      %277 = vst.msk [vmem:[#allocation2] sm:$0x1] %vm276, %v275
    $region25: #{masked_l2_loss.1} parent=1 // pred_fallthru
      _
    // Predicated region
    $region26: #{masked_l2_loss.1} parent=1 // pred_check
      %p278 = pneg %p112
    $region27: #{masked_l2_loss.1} parent=1 // pred_check_branch
      %280 = sbr.rel (%p278) target = $region29
    $region28: #{masked_l2_loss.1} parent=1 // pred_region
      %v281 = vld [vmem:[#allocation2] sm:$0x1]
      %vm282 = vcmask 122880
      %283 = vst.msk [vmem:[%s3] sm:$0x1] %vm282, %v281
    $region29: #{masked_l2_loss.1} parent=1 // pred_fallthru
      _
    // Predicated region
    $region30: #{masked_l2_loss.1} parent=1 // pred_check
      _
    $region31: #{masked_l2_loss.1} parent=1 // pred_check_branch
      %285 = sbr.rel (0) target = $region33
    $region32: #{masked_l2_loss.1} parent=1 // pred_region
      _
    $region33: #{masked_l2_loss.1} parent=1 // pred_fallthru
      _
    // Predicated region
    $region34: #{masked_l2_loss.1} parent=1 // pred_check
      _
    $region35: #{masked_l2_loss.1} parent=1 // pred_check_branch
      %287 = sbr.rel (0) target = $region37
    $region36: #{masked_l2_loss.1} parent=1 // pred_region
      _
    $region37: #{masked_l2_loss.1} parent=1 // pred_fallthru
      _
    %288 = vsyncpa [#allocation4], 1

</llo_original>
